<compile_context>
chip_gen: v7x
topology: tpu7x:2x2x1
jax: 0.10.0
libtpu: 0.0.40
codegen_flags: <defaults>
</compile_context>

<pallas_src>
import jax
import jax.numpy as jnp
import numpy as np
from jax.experimental import pallas as pl
from jax.experimental.pallas import tpu as pltpu

HIDDEN = 480          # fixed by nn.Linear(480, alphabet_size)
ALPHABET_SIZE = 33    # ESM alphabet size
LN_EPS = 1e-5
LANES = 128
_VMEM_BUDGET = 24 * 1024 * 1024   # budget for double-buffered activation tiles
_NEG_INF = -1e9


def _round_up(x, m):
    return (x + m - 1) // m * m


def _ln_classifier_kernel(h_ref, w_ref, wsum_ref, b_ref, out_ref):
    """Fused LayerNorm + (affine-folded) Linear, matmul-first.

    h_ref:    (TM, 480)    hidden-state rows (bf16 or f32)
    w_ref:    (480, Apad)  gamma-folded classifier weight, bf16, lane-padded
    wsum_ref: (1, Apad)    column sums of the (bf16-effective) folded weight, f32
    b_ref:    (1, Apad)    beta-folded bias, f32 (-1e9 in pad lanes)
    out_ref:  (TM, Apad)   logits tile (lane-dense)
    """
    h = h_ref[...]
    # MXU matmul on raw (uncentered) bf16 activations — independent of the LN
    # reductions, so it overlaps with the statistics below.
    s = jnp.dot(h.astype(jnp.bfloat16), w_ref[...],
                preferred_element_type=jnp.float32)            # (TM, Apad) f32
    # LayerNorm statistics in f32 (v5e has no bf16 VPU/EUP).
    x = h.astype(jnp.float32)                                  # (TM, 480)
    mu = jnp.mean(x, axis=-1, keepdims=True)                   # (TM, 1)
    ex2 = jnp.mean(x * x, axis=-1, keepdims=True)              # (TM, 1)
    inv = jax.lax.rsqrt(ex2 - mu * mu + LN_EPS)                # (TM, 1)
    # ((x - mu) * inv) @ W' + b'  ==  inv * (x @ W' - mu * colsum(W')) + b'
    out_ref[...] = (inv * (s - mu * wsum_ref[...]) + b_ref[...]).astype(out_ref.dtype)


def esm_classifier_head(hidden_states, ln_gamma, ln_beta, w, b, *,
                        tile_m=4096, out_dtype=jnp.float32,
                        return_padded=False):
    """hidden_states: (B, L, 480) -> logits (B*L, alphabet_size).

    With return_padded=True the lane-padded (B*L, 128) slab is returned
    directly (pad columns pinned to -1e9) so a fused consumer can avoid the
    post-call slice copy.
    """
    B, L, C = hidden_states.shape
    assert C == HIDDEN
    N = B * L
    A = w.shape[0]                       # nn.Linear stores weight as (out, in)
    A_pad = _round_up(A, LANES)

    # ---- Host-side (one-time) parameter preparation ------------------------
    # Fold the LayerNorm affine into the classifier:
    #   (xn*gamma + beta) @ W^T + b == xn @ (gamma[:,None]*W^T) + (beta@W^T + b)
    w_t = w.astype(jnp.float32).T                                   # (480, A)
    w_folded = ln_gamma.astype(jnp.float32)[:, None] * w_t          # (480, A)
    w_p = jnp.zeros((C, A_pad), jnp.bfloat16).at[:, :A].set(
        w_folded.astype(jnp.bfloat16))
    # Use the bf16-cast weight (what the MXU actually multiplies) for the
    # folded bias and the column sums, keeping host/kernel math consistent.
    w_eff = w_p.astype(jnp.float32)                                 # (480, Apad)
    b_valid = ln_beta.astype(jnp.float32) @ w_eff[:, :A] + b.astype(jnp.float32)
    b_p = jnp.full((1, A_pad), _NEG_INF, jnp.float32).at[0, :A].set(b_valid)
    wsum = jnp.sum(w_eff, axis=0, keepdims=True)                    # (1, Apad)

    # ---- Row tiling (no host-side padding of the activations) --------------
    tile_m = _round_up(max(8, int(tile_m)), 8)
    # Keep the grid >= 2 steps so both v7x TensorCores are used; also avoids
    # oversizing the tile for tiny inputs.  Harmless on single-TC chips.
    tile_m = min(tile_m, _round_up(pl.cdiv(N, 2), 8))

    in_bytes = jnp.dtype(hidden_states.dtype).itemsize
    out_bytes = jnp.dtype(out_dtype).itemsize

    def _tile_bytes(tm):   # double-buffered activation tiles
        return 2 * tm * C * in_bytes + 2 * tm * A_pad * out_bytes

    while tile_m > 8 and _tile_bytes(tile_m) > _VMEM_BUDGET:
        tile_m = _round_up(tile_m // 2, 8)

    grid_m = pl.cdiv(N, tile_m)          # ragged last block handled by Pallas
    h2d = hidden_states.reshape(N, C)    # matches .reshape(-1, 480)

    weight_bytes = C * A_pad * 2 + 2 * A_pad * 4
    vmem_need = _tile_bytes(tile_m) + 2 * weight_bytes + (2 << 20)
    vmem_limit = int(min(max(vmem_need, 8 << 20), 32 << 20))

    cost = pl.CostEstimate(
        flops=2 * N * C * A_pad,
        transcendentals=N,
        bytes_accessed=N * C * in_bytes + N * A_pad * out_bytes + weight_bytes)

    out = pl.pallas_call(
        _ln_classifier_kernel,
        out_shape=jax.ShapeDtypeStruct((N, A_pad), out_dtype),
        grid_spec=pltpu.PrefetchScalarGridSpec(
            num_scalar_prefetch=0,
            grid=(grid_m,),
            in_specs=[
                pl.BlockSpec((tile_m, C), lambda i: (i, 0)),    # hidden rows
                pl.BlockSpec((C, A_pad), lambda i: (0, 0)),     # folded W^T
                pl.BlockSpec((1, A_pad), lambda i: (0, 0)),     # colsum(W')
                pl.BlockSpec((1, A_pad), lambda i: (0, 0)),     # folded bias
            ],
            out_specs=pl.BlockSpec((tile_m, A_pad), lambda i: (i, 0)),
        ),
        compiler_params=pltpu.CompilerParams(
            dimension_semantics=("parallel",),
            vmem_limit_bytes=vmem_limit),
        cost_estimate=cost,
    )(h2d, w_p, wsum, b_p)

    if return_padded:
        return out                      # (N, A_pad): consumer indexes/fuses
    return out[:N, :A]                  # module contract: (B*L, alphabet_size)


def reference(hidden_states, ln_gamma, ln_beta, w, b):
    x = hidden_states.astype(jnp.float32)
    mu = jnp.mean(x, axis=-1, keepdims=True)
    var = jnp.mean((x - mu) ** 2, axis=-1, keepdims=True)
    xn = (x - mu) * jax.lax.rsqrt(var + LN_EPS)
    reps = xn * ln_gamma + ln_beta
    return reps.reshape(-1, HIDDEN) @ w.astype(jnp.float32).T + b


if __name__ == "__main__":
    key = jax.random.PRNGKey(0)
    k_emb, k_tok, k_g, k_bt, k_w, k_b, k_tok2 = jax.random.split(key, 7)

    B, L = 2, 8                                     # small demo shapes
    vocab = ALPHABET_SIZE

    # Deterministic synthetic parameters.
    embed_table = jax.random.normal(k_emb, (vocab, HIDDEN), jnp.float32) * 0.02
    # Non-trivial LN affine so the weight folding is actually exercised.
    ln_gamma = 1.0 + 0.1 * jax.random.normal(k_g, (HIDDEN,), jnp.float32)
    ln_beta = 0.05 * jax.random.normal(k_bt, (HIDDEN,), jnp.float32)
    # classifier: nn.Linear(480, alphabet_size) -> weight (A, 480), bias (A,)
    w = jax.random.normal(k_w, (ALPHABET_SIZE, HIDDEN), jnp.float32) * 0.02
    b = jax.random.normal(k_b, (ALPHABET_SIZE,), jnp.float32) * 0.01

    # Input token ids (B, L).
    x_tokens = jax.random.randint(k_tok, (B, L), 0, vocab, jnp.int32)

    # Stand-in ESM hidden states: embedding lookup (plain-JAX glue), stored in
    # bf16 as a backbone output would be (halves HBM read traffic).
    hidden_states = jnp.take(embed_table, x_tokens, axis=0).astype(jnp.bfloat16)

    out = esm_classifier_head(hidden_states, ln_gamma, ln_beta, w, b)
    out = jax.block_until_ready(out)

    ref = reference(hidden_states, ln_gamma, ln_beta, w, b)
    # bf16 MXU operands with f32 accumulation -> loosened tolerance vs f32 ref.
    np.testing.assert_allclose(np.asarray(out), np.asarray(ref),
                               rtol=2e-2, atol=2e-2)
    assert out.shape == (B * L, ALPHABET_SIZE)

    # Second config with a ragged row count (B*L not a multiple of tile_m) to
    # exercise the no-host-pad partial-block path.
    B2, L2 = 2, 9
    x_tokens2 = jax.random.randint(k_tok2, (B2, L2), 0, vocab, jnp.int32)
    hidden2 = jnp.take(embed_table, x_tokens2, axis=0).astype(jnp.bfloat16)
    out2 = jax.block_until_ready(
        esm_classifier_head(hidden2, ln_gamma, ln_beta, w, b))
    ref2 = reference(hidden2, ln_gamma, ln_beta, w, b)
    np.testing.assert_allclose(np.asarray(out2), np.asarray(ref2),
                               rtol=2e-2, atol=2e-2)
    assert out2.shape == (B2 * L2, ALPHABET_SIZE)

    print("KERNEL_OK")
</pallas_src>

<mosaic_0001>
module attributes {stable_mosaic.version = 11 : i64} {
  func.func @_ln_classifier_kernel(%arg0: i32, %arg1: memref<8x480xbf16, #tpu.memory_space<vmem>>, %arg2: memref<480x128xbf16, #tpu.memory_space<vmem>>, %arg3: memref<1x128xf32, #tpu.memory_space<vmem>>, %arg4: memref<1x128xf32, #tpu.memory_space<vmem>>, %arg5: memref<8x128xf32, #tpu.memory_space<vmem>>) attributes {dimension_semantics = [#tpu.dimension_semantics<parallel>], iteration_bounds = array<i64: 2>, scalar_prefetch = 0 : i64, scratch_operands = 0 : i64, tpu.core_type = #tpu.core_type<tc>, window_params = [{transform_indices = @transform_0, window_bounds = array<i64: 8, 480>}, {pipeline_mode = #tpu.pipeline_mode<synchronous>, transform_indices = @transform_1, window_bounds = array<i64: 480, 128>}, {pipeline_mode = #tpu.pipeline_mode<synchronous>, transform_indices = @transform_2, window_bounds = array<i64: 1, 128>}, {pipeline_mode = #tpu.pipeline_mode<synchronous>, transform_indices = @transform_3, window_bounds = array<i64: 1, 128>}, {transform_indices = @transform_4, window_bounds = array<i64: 8, 128>}]} {
    %c0 = arith.constant 0 : index
    %c0_0 = arith.constant 0 : index
    %0 = vector.load %arg1[%c0, %c0_0] : memref<8x480xbf16, #tpu.memory_space<vmem>>, vector<8x480xbf16>
    %c0_1 = arith.constant 0 : index
    %c0_2 = arith.constant 0 : index
    %1 = vector.load %arg2[%c0_1, %c0_2] : memref<480x128xbf16, #tpu.memory_space<vmem>>, vector<480x128xbf16>
    %cst = arith.constant dense<0.000000e+00> : vector<8x128xf32>
    %2 = tpu.matmul %0, %1, %cst {dimension_numbers = #tpu.dot_dimension_numbers<[1], [0], [0], [1], [0, 0, 1, 1], [], []>} : vector<8x480xbf16>, vector<480x128xbf16>, vector<8x128xf32> -> vector<8x128xf32>
    %3 = arith.extf %0 : vector<8x480xbf16> to vector<8x480xf32>
    %cst_3 = arith.constant dense<0.000000e+00> : vector<8xf32>
    %4 = vector.multi_reduction <add>, %3, %cst_3 [1] : vector<8x480xf32> to vector<8xf32>
    %5 = vector.shape_cast %4 : vector<8xf32> to vector<8x1xf32>
    %cst_4 = arith.constant 4.800000e+02 : f32
    %6 = vector.broadcast %cst_4 : f32 to vector<8x1xf32>
    %7 = arith.divf %5, %6 : vector<8x1xf32>
    %8 = arith.mulf %3, %3 : vector<8x480xf32>
    %cst_5 = arith.constant dense<0.000000e+00> : vector<8xf32>
    %9 = vector.multi_reduction <add>, %8, %cst_5 [1] : vector<8x480xf32> to vector<8xf32>
    %10 = vector.shape_cast %9 : vector<8xf32> to vector<8x1xf32>
    %cst_6 = arith.constant 4.800000e+02 : f32
    %11 = vector.broadcast %cst_6 : f32 to vector<8x1xf32>
    %12 = arith.divf %10, %11 : vector<8x1xf32>
    %13 = arith.mulf %7, %7 : vector<8x1xf32>
    %14 = arith.subf %12, %13 : vector<8x1xf32>
    %cst_7 = arith.constant 9.99999974E-6 : f32
    %15 = vector.broadcast %cst_7 : f32 to vector<8x1xf32>
    %16 = arith.addf %14, %15 : vector<8x1xf32>
    %17 = math.rsqrt %16 : vector<8x1xf32>
    %c0_8 = arith.constant 0 : index
    %c0_9 = arith.constant 0 : index
    %18 = vector.load %arg3[%c0_8, %c0_9] : memref<1x128xf32, #tpu.memory_space<vmem>>, vector<1x128xf32>
    %19 = vector.broadcast %7 : vector<8x1xf32> to vector<8x128xf32>
    %20 = vector.broadcast %18 : vector<1x128xf32> to vector<8x128xf32>
    %21 = arith.mulf %19, %20 : vector<8x128xf32>
    %22 = arith.subf %2, %21 : vector<8x128xf32>
    %23 = vector.broadcast %17 : vector<8x1xf32> to vector<8x128xf32>
    %24 = arith.mulf %23, %22 : vector<8x128xf32>
    %c0_10 = arith.constant 0 : index
    %c0_11 = arith.constant 0 : index
    %25 = vector.load %arg4[%c0_10, %c0_11] : memref<1x128xf32, #tpu.memory_space<vmem>>, vector<1x128xf32>
    %26 = vector.broadcast %25 : vector<1x128xf32> to vector<8x128xf32>
    %27 = arith.addf %24, %26 : vector<8x128xf32>
    %c0_12 = arith.constant 0 : index
    %c0_13 = arith.constant 0 : index
    %28 = vector.load %arg5[%c0_12, %c0_13] : memref<8x128xf32, #tpu.memory_space<vmem>>, vector<8x128xf32>
    tpu.vector_store %arg5[%c0_12, %c0_13], %27 {strides = array<i32>} : memref<8x128xf32, #tpu.memory_space<vmem>>, vector<8x128xf32>,
    return
  }
  func.func @transform_0(%arg0: i32) -> (i32, i32) {
    %c0_i32 = arith.constant 0 : i32
    %c0_i32_0 = arith.constant 0 : i32
    return %arg0, %c0_i32 : i32, i32
  }
  func.func @transform_1(%arg0: i32) -> (i32, i32) {
    %c0_i32 = arith.constant 0 : i32
    %c0_i32_0 = arith.constant 0 : i32
    %c0_i32_1 = arith.constant 0 : i32
    return %c0_i32, %c0_i32_0 : i32, i32
  }
  func.func @transform_2(%arg0: i32) -> (i32, i32) {
    %c0_i32 = arith.constant 0 : i32
    %c0_i32_0 = arith.constant 0 : i32
    %c0_i32_1 = arith.constant 0 : i32
    return %c0_i32, %c0_i32_0 : i32, i32
  }
  func.func @transform_3(%arg0: i32) -> (i32, i32) {
    %c0_i32 = arith.constant 0 : i32
    %c0_i32_0 = arith.constant 0 : i32
    %c0_i32_1 = arith.constant 0 : i32
    return %c0_i32, %c0_i32_0 : i32, i32
  }
  func.func @transform_4(%arg0: i32) -> (i32, i32) {
    %c0_i32 = arith.constant 0 : i32
    %c0_i32_0 = arith.constant 0 : i32
    return %arg0, %c0_i32 : i32, i32
  }
}

</mosaic_0001>

<llo_original>
// kernel: tpu_custom_call.1
$region0: #{tpu_custom_call.1}
  #allocation0 [shape = 'u32[]', space=smem, size = 0x4, offset = 0x4, fixed_abs, tag = 'smem constant byte address 0x4 - core index']
  #allocation1 [shape = 'u32[144,128]{1,0:T(1,128)}', space=vmem, size = 0x12000, scoped, tag = 'internal scratch']
  %s0 = inlined_call_operand.hbm [shape: bf16[16,480], index: 0, kind: input, shape index: {}]
  %s1 = inlined_call_operand.hbm [shape: bf16[480,128], index: 1, kind: input, shape index: {}]
  %s2 = inlined_call_operand.vmem [shape: f32[1,128], index: 2, kind: input, shape index: {}]
  %s3 = inlined_call_operand.vmem [shape: f32[1,128], index: 3, kind: input, shape index: {}]
  %s4 = inlined_call_operand.hbm [shape: f32[16,128], index: 4, kind: output, shape index: {}]
  %s5 = sld [smem:[#allocation0]]
  $region57: #{tpu_custom_call.1} parent=0
    _
  %s7 = ssub.s32 1, %s5
  %s8 = scalar_select 0, %s7, %s5
  $region1: #{tpu_custom_call.1} parent=0
    #allocation2 [shape = 'u8[16384]{0}', space=vmem, size = 0x4000, scoped, tag = 'input window, operand 0']
    #allocation3 [shape = 's32[2]{0}', space=sflag, size = 0x8, scoped, tag = 'scoped memory for tpu_custom_call.1']
    #allocation4 [shape = 's32[2]{0}', space=sflag, size = 0x8, scoped, tag = 'scoped memory for tpu_custom_call.1']
    #allocation5 [shape = 'u8[122880]{0}', space=vmem, size = 0x1e000, scoped, tag = 'input window, operand 1, single buffered']
    #allocation6 [shape = 's32[1]{0}', space=sflag, size = 0x4, scoped, tag = 'scoped memory for tpu_custom_call.1']
    #allocation7 [shape = 'u8[8192]{0}', space=vmem, size = 0x2000, scoped, tag = 'output window, operand 0']
    %9 = vsyncpa [#allocation3], 0
    %s10 = scalar_lea.sflag [#allocation3], 1
    %11 = vsyncpa %s10, 0
    %12 = vsyncpa [#allocation6], 0
    %13 = vsyncpa [#allocation4], 0
    %s14 = scalar_lea.sflag [#allocation4], 1
    %15 = vsyncpa %s14, 0
    loop: start=0, step=1, limit=4
    $region2: #{tpu_custom_call.1} parent=1 // loop_pre_header
      _
    $region3: #{tpu_custom_call.1} parent=1 // loop_header
      %s17 = sphi 0, %s21
      %p18 = scmp.ge.s32.totalorder %s17, 4
      %s27 = sphi 0, %s29
      %s30 = sphi 0, %s27
      %s31 = sphi 0, %s30
      %s47 = sphi 0, %s31
      %s51 = sphi 0, %s51
      %s53 = sphi 0, %s51
      %s54 = sphi 0, %s53
      %s68 = sphi 0, %s54
      %s72 = sphi 0, %s72
      %s74 = sphi 0, %s72
      %s75 = sphi 0, %s74
      %s89 = sphi 0, %s75
      %s93 = sphi 0, %s93
      %s95 = sphi 0, %s93
      %s96 = sphi 0, %s95
      %s110 = sphi 0, %s96
      %s116 = sphi 0, %s118
      %s119 = sphi 0, %s116
      %s120 = sphi 0, %s119
      %s136 = sphi 0, %s120
    $region4: #{tpu_custom_call.1} parent=1 // loop_header_branch
      %20 = sbr.rel (%p18) target = $region8
    $region5: #{tpu_custom_call.1} parent=1 // loop_body
      %s22 = ssub.s32 %s17, 1
      %s23 = ssub.s32 %s17, 2
      %s24 = sadd.s32 %s17, 1
      %s25 = ssub.s32 %s17, %s24
      %p26 = scmp.eq.s32.totalorder %s25, 0
      %s28 = sadd.s32 %s27, 1
      %s29 = scalar_select %p26, %s27, %s28
      %p32 = pneg %p26
      %p33 = scmp.eq.s32.totalorder %s17, 1
      %p34 = por %p32, %p33
      %p35 = scmp.ne.s32.totalorder %s27, %s30
      %p36 = scmp.eq.s32.totalorder %s17, 0
      %p37 = por %p35, %p36
      %p38 = scmp.ne.s32.totalorder %s27, %s30
      %p39 = scmp.eq.s32.totalorder %s22, 1
      %p40 = por %p38, %p39
      %p41 = scmp.ne.s32.totalorder %s30, %s31
      %p42 = scmp.eq.s32.totalorder %s22, 0
      %p43 = por %p41, %p42
      %p44 = scmp.ne.s32.totalorder %s30, %s31
      %p45 = scmp.eq.s32.totalorder %s23, 1
      %p46 = por %p44, %p45
      %p48 = scmp.ne.s32.totalorder %s31, %s47
      %p49 = scmp.eq.s32.totalorder %s23, 0
      %p50 = por %p48, %p49
      %s52 = sadd.s32 %s51, 1
      %p55 = scmp.eq.s32.totalorder %s17, 1
      %p56 = scmp.ne.s32.totalorder %s51, %s53
      %p57 = scmp.eq.s32.totalorder %s17, 0
      %p58 = por %p56, %p57
      %p59 = scmp.ne.s32.totalorder %s51, %s53
      %p60 = scmp.eq.s32.totalorder %s22, 1
      %p61 = por %p59, %p60
      %p62 = scmp.ne.s32.totalorder %s53, %s54
      %p63 = scmp.eq.s32.totalorder %s22, 0
      %p64 = por %p62, %p63
      %p65 = scmp.ne.s32.totalorder %s53, %s54
      %p66 = scmp.eq.s32.totalorder %s23, 1
      %p67 = por %p65, %p66
      %p69 = scmp.ne.s32.totalorder %s54, %s68
      %p70 = scmp.eq.s32.totalorder %s23, 0
      %p71 = por %p69, %p70
      %s73 = sadd.s32 %s72, 1
      %p76 = scmp.eq.s32.totalorder %s17, 1
      %p77 = scmp.ne.s32.totalorder %s72, %s74
      %p78 = scmp.eq.s32.totalorder %s17, 0
      %p79 = por %p77, %p78
      %p80 = scmp.ne.s32.totalorder %s72, %s74
      %p81 = scmp.eq.s32.totalorder %s22, 1
      %p82 = por %p80, %p81
      %p83 = scmp.ne.s32.totalorder %s74, %s75
      %p84 = scmp.eq.s32.totalorder %s22, 0
      %p85 = por %p83, %p84
      %p86 = scmp.ne.s32.totalorder %s74, %s75
      %p87 = scmp.eq.s32.totalorder %s23, 1
      %p88 = por %p86, %p87
      %p90 = scmp.ne.s32.totalorder %s75, %s89
      %p91 = scmp.eq.s32.totalorder %s23, 0
      %p92 = por %p90, %p91
      %s94 = sadd.s32 %s93, 1
      %p97 = scmp.eq.s32.totalorder %s17, 1
      %p98 = scmp.ne.s32.totalorder %s93, %s95
      %p99 = scmp.eq.s32.totalorder %s17, 0
      %p100 = por %p98, %p99
      %p101 = scmp.ne.s32.totalorder %s93, %s95
      %p102 = scmp.eq.s32.totalorder %s22, 1
      %p103 = por %p101, %p102
      %p104 = scmp.ne.s32.totalorder %s95, %s96
      %p105 = scmp.eq.s32.totalorder %s22, 0
      %p106 = por %p104, %p105
      %p107 = scmp.ne.s32.totalorder %s95, %s96
      %p108 = scmp.eq.s32.totalorder %s23, 1
      %p109 = por %p107, %p108
      %p111 = scmp.ne.s32.totalorder %s96, %s110
      %p112 = scmp.eq.s32.totalorder %s23, 0
      %p113 = por %p111, %p112
      %s114 = ssub.s32 %s17, %s24
      %p115 = scmp.eq.s32.totalorder %s114, 0
      %s117 = sadd.s32 %s116, 1
      %s118 = scalar_select %p115, %s116, %s117
      %p121 = pneg %p115
      %p122 = scmp.eq.s32.totalorder %s17, 1
      %p123 = por %p121, %p122
      %p124 = scmp.ne.s32.totalorder %s116, %s119
      %p125 = scmp.eq.s32.totalorder %s17, 0
      %p126 = por %p124, %p125
      %p127 = scmp.ne.s32.totalorder %s116, %s119
      %p128 = scmp.eq.s32.totalorder %s22, 1
      %p129 = por %p127, %p128
      %p130 = scmp.ne.s32.totalorder %s119, %s120
      %p131 = scmp.eq.s32.totalorder %s22, 0
      %p132 = por %p130, %p131
      %p133 = scmp.ne.s32.totalorder %s119, %s120
      %p134 = scmp.eq.s32.totalorder %s23, 1
      %p135 = por %p133, %p134
      %p137 = scmp.ne.s32.totalorder %s120, %s136
      %p138 = scmp.eq.s32.totalorder %s23, 0
      %p139 = por %p137, %p138
      %p140 = scmp.le.s32.totalorder 1, %s17
      %p141 = scmp.lt.s32.totalorder %s17, 3
      %p142 = pnand %p140, %p141
      %p143 = pneg %p142
      // Predicated region
      $region9: #{tpu_custom_call.1} parent=5 // pred_check
        _
      $region10: #{tpu_custom_call.1} parent=5 // pred_check_branch
        %145 = sbr.rel (%p142) target = $region12
      $region11: #{tpu_custom_call.1} parent=5 // pred_region
        %s146 = ssub.s32 %s17, 1
        // Predicated region
        $region13: #{tpu_custom_call.1} parent=11 // pred_check
          %p147 = pneg %p64
        $region14: #{tpu_custom_call.1} parent=11 // pred_check_branch
          %149 = sbr.rel (%p147) target = $region16
        $region15: #{tpu_custom_call.1} parent=11 // pred_region
          %s151 = ssub.s32 3840, 3840
          %152 = vsyncadd [#allocation6], %s151
          %s153 = sshll.u32 [#allocation5], 4
          %s154 = int_to_ptr.vmem [resolvable:$true] %s153
          %159 = dma.hbm_to_vmem [thread:$0]  %s1, 3840, %s154, [#allocation6], 64, 64, 4
        $region16: #{tpu_custom_call.1} parent=11 // pred_fallthru
          _
        // Predicated region
        $region17: #{tpu_custom_call.1} parent=11 // pred_check
          %p160 = pneg %p85
        $region18: #{tpu_custom_call.1} parent=11 // pred_check_branch
          %162 = sbr.rel (%p160) target = $region20
        $region19: #{tpu_custom_call.1} parent=11 // pred_region
          _
        $region20: #{tpu_custom_call.1} parent=11 // pred_fallthru
          _
        // Predicated region
        $region21: #{tpu_custom_call.1} parent=11 // pred_check
          %p163 = pneg %p106
        $region22: #{tpu_custom_call.1} parent=11 // pred_check_branch
          %165 = sbr.rel (%p163) target = $region24
        $region23: #{tpu_custom_call.1} parent=11 // pred_region
          _
        $region24: #{tpu_custom_call.1} parent=11 // pred_fallthru
          _
      $region12: #{tpu_custom_call.1} parent=5 // pred_fallthru
        _
      %p166 = scmp.lt.s32.totalorder %s17, 2
      // Predicated region
      $region25: #{tpu_custom_call.1} parent=5 // pred_check
        %p167 = pneg %p166
      $region26: #{tpu_custom_call.1} parent=5 // pred_check_branch
        %169 = sbr.rel (%p167) target = $region28
      $region27: #{tpu_custom_call.1} parent=5 // pred_region
        // Predicated region
        $region29: #{tpu_custom_call.1} parent=27 // pred_check
          %p170 = pneg %p37
        $region30: #{tpu_custom_call.1} parent=27 // pred_check_branch
          %172 = sbr.rel (%p170) target = $region32
        $region31: #{tpu_custom_call.1} parent=27 // pred_region
          %s173 = sand.u32 %s27, 1
          %s174 = scalar_lea.sflag [#allocation3], %s173
          %s175 = sand.u32 %s27, 1
          %s176 = smul.addr %s175, 16
          %s177 = scalar_lea.vmem [#allocation2], %s176
          %s179 = ssub.s32 256, 256
          %180 = vsyncadd %s174, %s179
          %s181 = smul.addr %s17, 4
          %s182 = smul.addr %s181, 64
          %s183 = scalar_lea.hbm %s0, %s182
          %s185 = sshll.u32 %s177, 4
          %s186 = int_to_ptr.vmem [resolvable:$true] %s185
          %188 = dma.hbm_to_vmem [thread:$0]  %s183, 256, %s186, %s174
        $region32: #{tpu_custom_call.1} parent=27 // pred_fallthru
          _
      $region28: #{tpu_custom_call.1} parent=5 // pred_fallthru
        _
      %p189 = scmp.le.s32.totalorder 1, %s17
      %p190 = scmp.lt.s32.totalorder %s17, 3
      %p191 = pnand %p189, %p190
      %p192 = pneg %p191
      // Predicated region
      $region33: #{tpu_custom_call.1} parent=5 // pred_check
        _
      $region34: #{tpu_custom_call.1} parent=5 // pred_check_branch
        %194 = sbr.rel (%p191) target = $region36
      $region35: #{tpu_custom_call.1} parent=5 // pred_region
        %s195 = ssub.s32 %s17, 1
        %s196 = sand.u32 %s30, 1
        %s197 = scalar_lea.sflag [#allocation3], %s196
        %s198 = sand.u32 %s30, 1
        %s199 = smul.addr %s198, 16
        %s200 = scalar_lea.vmem [#allocation2], %s199
        // Predicated region
        $region37: #{tpu_custom_call.1} parent=35 // pred_check
          %p201 = pneg %p43
        $region38: #{tpu_custom_call.1} parent=35 // pred_check_branch
          %203 = sbr.rel (%p201) target = $region40
        $region39: #{tpu_custom_call.1} parent=35 // pred_region
          %204 = dma.done %s197, 256
        $region40: #{tpu_custom_call.1} parent=35 // pred_fallthru
          _
        // Predicated region
        $region41: #{tpu_custom_call.1} parent=35 // pred_check
          %p205 = pneg %p64
        $region42: #{tpu_custom_call.1} parent=35 // pred_check_branch
          %207 = sbr.rel (%p205) target = $region44
        $region43: #{tpu_custom_call.1} parent=35 // pred_region
          %208 = dma.done [#allocation6], 3840
        $region44: #{tpu_custom_call.1} parent=35 // pred_fallthru
          _
        %s209 = sand.u32 %s30, 1
        %s210 = scalar_lea.sflag [#allocation3], %s209
        %s211 = sand.u32 %s30, 1
        %s212 = smul.addr %s211, 16
        %s213 = scalar_lea.vmem [#allocation2], %s212
        %p214 = pneg %p43
        %p215 = pneg %p40
        %p216 = pneg %p64
        %p217 = pneg %p61
        %p218 = pneg %p85
        %p219 = pneg %p82
        %p220 = pneg %p106
        %p221 = pneg %p103
        %p222 = pneg %p132
        %p223 = pneg %p129
        %s224 = sand.u32 %s119, 1
        %s225 = scalar_lea.sflag [#allocation4], %s224
        %s226 = sand.u32 %s119, 1
        %s227 = smul.addr %s226, 8
        %s228 = scalar_lea.vmem [#allocation7], %s227
        %v230 = vld [vmem:[%s200] sm:$0xff]
        %v231 = vld [vmem:[%s200 + $0x8] sm:$0xff]
        %v232 = vld [vmem:[#allocation5] sm:$0xf]
        %v233 = vld [vmem:[#allocation5 + $0x4] sm:$0xf]
        %v234 = vld [vmem:[#allocation5 + $0x8] sm:$0xf]
        %v235 = vld [vmem:[#allocation5 + $0xc] sm:$0xf]
        %v236 = vld [vmem:[#allocation5 + $0x10] sm:$0xf]
        %v237 = vld [vmem:[#allocation5 + $0x14] sm:$0xf]
        %v238 = vld [vmem:[#allocation5 + $0x18] sm:$0xf]
        %v239 = vld [vmem:[#allocation5 + $0x1c] sm:$0xf]
        %v240 = vld [vmem:[#allocation5 + $0x20] sm:$0xf]
        %v241 = vld [vmem:[#allocation5 + $0x24] sm:$0xf]
        %v242 = vld [vmem:[#allocation5 + $0x28] sm:$0xf]
        %v243 = vld [vmem:[#allocation5 + $0x2c] sm:$0xf]
        %v244 = vld [vmem:[#allocation5 + $0x30] sm:$0xf]
        %v245 = vld [vmem:[#allocation5 + $0x34] sm:$0xf]
        %v246 = vld [vmem:[#allocation5 + $0x38] sm:$0xf]
        %v247 = vld [vmem:[#allocation5 + $0x3c] sm:$0xf]
        %v248 = vld [vmem:[#allocation5 + $0x40] sm:$0xf]
        %v249 = vld [vmem:[#allocation5 + $0x44] sm:$0xf]
        %v250 = vld [vmem:[#allocation5 + $0x48] sm:$0xf]
        %v251 = vld [vmem:[#allocation5 + $0x4c] sm:$0xf]
        %v252 = vld [vmem:[#allocation5 + $0x50] sm:$0xf]
        %v253 = vld [vmem:[#allocation5 + $0x54] sm:$0xf]
        %v254 = vld [vmem:[#allocation5 + $0x58] sm:$0xf]
        %v255 = vld [vmem:[#allocation5 + $0x5c] sm:$0xf]
        %v256 = vld [vmem:[#allocation5 + $0x60] sm:$0xf]
        %v257 = vld [vmem:[#allocation5 + $0x64] sm:$0xf]
        %v258 = vld [vmem:[#allocation5 + $0x68] sm:$0xf]
        %v259 = vld [vmem:[#allocation5 + $0x6c] sm:$0xf]
        %v260 = vld [vmem:[#allocation5 + $0x70] sm:$0xf]
        %v261 = vld [vmem:[#allocation5 + $0x74] sm:$0xf]
        %v262 = vld [vmem:[#allocation5 + $0x78] sm:$0xf]
        %v263 = vld [vmem:[#allocation5 + $0x7c] sm:$0xf]
        %v264 = vld [vmem:[#allocation5 + $0x80] sm:$0xf]
        %v265 = vld [vmem:[#allocation5 + $0x84] sm:$0xf]
        %v266 = vld [vmem:[#allocation5 + $0x88] sm:$0xf]
        %v267 = vld [vmem:[#allocation5 + $0x8c] sm:$0xf]
        %v268 = vld [vmem:[#allocation5 + $0x90] sm:$0xf]
        %v269 = vld [vmem:[#allocation5 + $0x94] sm:$0xf]
        %v270 = vld [vmem:[#allocation5 + $0x98] sm:$0xf]
        %v271 = vld [vmem:[#allocation5 + $0x9c] sm:$0xf]
        %v272 = vld [vmem:[#allocation5 + $0xa0] sm:$0xf]
        %v273 = vld [vmem:[#allocation5 + $0xa4] sm:$0xf]
        %v274 = vld [vmem:[#allocation5 + $0xa8] sm:$0xf]
        %v275 = vld [vmem:[#allocation5 + $0xac] sm:$0xf]
        %v276 = vld [vmem:[#allocation5 + $0xb0] sm:$0xf]
        %v277 = vld [vmem:[#allocation5 + $0xb4] sm:$0xf]
        %v278 = vld [vmem:[#allocation5 + $0xb8] sm:$0xf]
        %v279 = vld [vmem:[#allocation5 + $0xbc] sm:$0xf]
        %v280 = vld [vmem:[#allocation5 + $0xc0] sm:$0xf]
        %v281 = vld [vmem:[#allocation5 + $0xc4] sm:$0xf]
        %v282 = vld [vmem:[#allocation5 + $0xc8] sm:$0xf]
        %v283 = vld [vmem:[#allocation5 + $0xcc] sm:$0xf]
        %v284 = vld [vmem:[#allocation5 + $0xd0] sm:$0xf]
        %v285 = vld [vmem:[#allocation5 + $0xd4] sm:$0xf]
        %v286 = vld [vmem:[#allocation5 + $0xd8] sm:$0xf]
        %v287 = vld [vmem:[#allocation5 + $0xdc] sm:$0xf]
        %v288 = vld [vmem:[#allocation5 + $0xe0] sm:$0xf]
        %v289 = vld [vmem:[#allocation5 + $0xe4] sm:$0xf]
        %v290 = vld [vmem:[#allocation5 + $0xe8] sm:$0xf]
        %v291 = vld [vmem:[#allocation5 + $0xec] sm:$0xf]
        %v294 = vunpack.c.l.b16 %v230
        %v295 = vunpack.c.h.b16 %v230
        %v296 = vunpack.c.l.b16 %v231
        %v297 = vunpack.c.h.b16 %v231
        %v298 = vpack.c.b16 %v294, %v294
        %v299 = vpack.c.b16 %v295, %v295
        %v300 = vpack.c.b16 %v296, %v296
        %v301 = vpack.c.b16 %v297, %v297
        %v365 = vunpack.c.l.b16 %v232
        %v366 = vunpack.c.l.b16 %v233
        %v367 = vunpack.c.l.b16 %v234
        %v368 = vunpack.c.l.b16 %v235
        %v369 = vunpack.c.l.b16 %v236
        %v370 = vunpack.c.l.b16 %v237
        %v371 = vunpack.c.l.b16 %v238
        %v372 = vunpack.c.l.b16 %v239
        %v373 = vunpack.c.l.b16 %v240
        %v374 = vunpack.c.l.b16 %v241
        %v375 = vunpack.c.l.b16 %v242
        %v376 = vunpack.c.l.b16 %v243
        %v377 = vunpack.c.l.b16 %v244
        %v378 = vunpack.c.l.b16 %v245
        %v379 = vunpack.c.l.b16 %v246
        %v380 = vunpack.c.l.b16 %v247
        %v381 = vunpack.c.l.b16 %v248
        %v382 = vunpack.c.l.b16 %v249
        %v383 = vunpack.c.l.b16 %v250
        %v384 = vunpack.c.l.b16 %v251
        %v385 = vunpack.c.l.b16 %v252
        %v386 = vunpack.c.l.b16 %v253
        %v387 = vunpack.c.l.b16 %v254
        %v388 = vunpack.c.l.b16 %v255
        %v389 = vunpack.c.l.b16 %v256
        %v390 = vunpack.c.l.b16 %v257
        %v391 = vunpack.c.l.b16 %v258
        %v392 = vunpack.c.l.b16 %v259
        %v393 = vunpack.c.l.b16 %v260
        %v394 = vunpack.c.l.b16 %v261
        %v395 = vunpack.c.l.b16 %v262
        %v396 = vunpack.c.l.b16 %v263
        %v397 = vunpack.c.l.b16 %v264
        %v398 = vunpack.c.l.b16 %v265
        %v399 = vunpack.c.l.b16 %v266
        %v400 = vunpack.c.l.b16 %v267
        %v401 = vunpack.c.l.b16 %v268
        %v402 = vunpack.c.l.b16 %v269
        %v403 = vunpack.c.l.b16 %v270
        %v404 = vunpack.c.l.b16 %v271
        %v405 = vunpack.c.l.b16 %v272
        %v406 = vunpack.c.l.b16 %v273
        %v407 = vunpack.c.l.b16 %v274
        %v408 = vunpack.c.l.b16 %v275
        %v409 = vunpack.c.l.b16 %v276
        %v410 = vunpack.c.l.b16 %v277
        %v411 = vunpack.c.l.b16 %v278
        %v412 = vunpack.c.l.b16 %v279
        %v413 = vunpack.c.l.b16 %v280
        %v414 = vunpack.c.l.b16 %v281
        %v415 = vunpack.c.l.b16 %v282
        %v416 = vunpack.c.l.b16 %v283
        %v417 = vunpack.c.l.b16 %v284
        %v418 = vunpack.c.l.b16 %v285
        %v419 = vunpack.c.l.b16 %v286
        %v420 = vunpack.c.l.b16 %v287
        %v421 = vunpack.c.l.b16 %v288
        %v422 = vunpack.c.l.b16 %v289
        %v423 = vunpack.c.l.b16 %v290
        %v424 = vunpack.c.l.b16 %v291
        %v425 = vpack.c.b16 %v366, %v365
        %v426 = vpack.c.b16 %v368, %v367
        %v427 = vpack.c.b16 %v370, %v369
        %v428 = vpack.c.b16 %v372, %v371
        %v429 = vpack.c.b16 %v374, %v373
        %v430 = vpack.c.b16 %v376, %v375
        %v431 = vpack.c.b16 %v378, %v377
        %v432 = vpack.c.b16 %v380, %v379
        %v433 = vpack.c.b16 %v382, %v381
        %v434 = vpack.c.b16 %v384, %v383
        %v435 = vpack.c.b16 %v386, %v385
        %v436 = vpack.c.b16 %v388, %v387
        %v437 = vpack.c.b16 %v390, %v389
        %v438 = vpack.c.b16 %v392, %v391
        %v439 = vpack.c.b16 %v394, %v393
        %v440 = vpack.c.b16 %v396, %v395
        %v441 = vpack.c.b16 %v398, %v397
        %v442 = vpack.c.b16 %v400, %v399
        %v443 = vpack.c.b16 %v402, %v401
        %v444 = vpack.c.b16 %v404, %v403
        %v445 = vpack.c.b16 %v406, %v405
        %v446 = vpack.c.b16 %v408, %v407
        %v447 = vpack.c.b16 %v410, %v409
        %v448 = vpack.c.b16 %v412, %v411
        %v449 = vpack.c.b16 %v414, %v413
        %v450 = vpack.c.b16 %v416, %v415
        %v451 = vpack.c.b16 %v418, %v417
        %v452 = vpack.c.b16 %v420, %v419
        %v453 = vpack.c.b16 %v422, %v421
        %v454 = vpack.c.b16 %v424, %v423
        %vm485 = vcmask 785408
        %v487 = vsel %vm485, %v301, 0
        %489 = vmatprep.subr.bf16.mxu0 0
        %490 = vmatpush1.bf16.msra.mxu0 %v425
        %491 = vmatprep.subr.bf16.mxu0 0
        %492 = vmatpush1.bf16.msra.mxu0 %v426
        %493 = vmatprep.subr.bf16.mxu0 0
        %494 = vmatpush1.bf16.msra.mxu0 %v427
        %495 = vmatprep.subr.bf16.mxu0 0
        %496 = vmatpush1.bf16.msra.mxu0 %v428
        %497 = vmatprep.subr.bf16.mxu0 0
        %498 = vmatpush1.bf16.msra.mxu0 %v429
        %499 = vmatprep.subr.bf16.mxu0 0
        %500 = vmatpush1.bf16.msra.mxu0 %v430
        %501 = vmatprep.subr.bf16.mxu0 0
        %502 = vmatpush1.bf16.msra.mxu0 %v431
        %503 = vmatprep.subr.bf16.mxu0 0
        %504 = vmatpush1.bf16.msra.mxu0 %v432
        %505 = vmatprep.subr.bf16.mxu0 0
        %506 = vmatpush1.bf16.msra.mxu0 %v433
        %507 = vmatprep.subr.bf16.mxu0 0
        %508 = vmatpush1.bf16.msra.mxu0 %v434
        %509 = vmatprep.subr.bf16.mxu0 0
        %510 = vmatpush1.bf16.msra.mxu0 %v435
        %511 = vmatprep.subr.bf16.mxu0 0
        %512 = vmatpush1.bf16.msra.mxu0 %v436
        %513 = vmatprep.subr.bf16.mxu0 0
        %514 = vmatpush1.bf16.msra.mxu0 %v437
        %515 = vmatprep.subr.bf16.mxu0 0
        %516 = vmatpush1.bf16.msra.mxu0 %v438
        %517 = vmatprep.subr.bf16.mxu0 0
        %518 = vmatpush1.bf16.msra.mxu0 %v439
        %519 = vmatprep.subr.bf16.mxu0 0
        %520 = vmatpush1.bf16.msra.mxu0 %v440
        %521 = vmatprep.mubr.bf16.mxu0 %v299
        %522 = vmatmul.mubr.bf16.gmra.mrb[0].mxu0 %v298
        %v523 = vpop.f32.mrb[0].mxu0
        %v524 = vadd.f32 0.0, %v523
        %v525 = vpop.f32.mrb[0].mxu0
        %v526 = vpop.f32.mrb[0].mxu0
        %v527 = vpop.f32.mrb[0].mxu0
        %528 = vdwg.mxu0
        %529 = vmatprep.subr.bf16.mxu0 0
        %530 = vmatpush1.bf16.msra.mxu0 %v441
        %531 = vmatprep.subr.bf16.mxu0 0
        %532 = vmatpush1.bf16.msra.mxu0 %v442
        %533 = vmatprep.subr.bf16.mxu0 0
        %534 = vmatpush1.bf16.msra.mxu0 %v443
        %535 = vmatprep.subr.bf16.mxu0 0
        %536 = vmatpush1.bf16.msra.mxu0 %v444
        %537 = vmatprep.subr.bf16.mxu0 0
        %538 = vmatpush1.bf16.msra.mxu0 %v445
        %539 = vmatprep.subr.bf16.mxu0 0
        %540 = vmatpush1.bf16.msra.mxu0 %v446
        %541 = vmatprep.subr.bf16.mxu0 0
        %542 = vmatpush1.bf16.msra.mxu0 %v447
        %543 = vmatprep.subr.bf16.mxu0 0
        %544 = vmatpush1.bf16.msra.mxu0 %v448
        %545 = vmatprep.subr.bf16.mxu0 0
        %546 = vmatpush1.bf16.msra.mxu0 %v449
        %547 = vmatprep.subr.bf16.mxu0 0
        %548 = vmatpush1.bf16.msra.mxu0 %v450
        %549 = vmatprep.subr.bf16.mxu0 0
        %550 = vmatpush1.bf16.msra.mxu0 %v451
        %551 = vmatprep.subr.bf16.mxu0 0
        %552 = vmatpush1.bf16.msra.mxu0 %v452
        %553 = vmatprep.subr.bf16.mxu0 0
        %554 = vmatpush1.bf16.msra.mxu0 %v453
        %555 = vmatprep.subr.bf16.mxu0 0
        %556 = vmatpush1.bf16.msra.mxu0 %v454
        %557 = vmatprep.subr.bf16.mxu0 0
        %558 = vmatpush1.bf16.msra.mxu0 0
        %559 = vmatprep.subr.bf16.mxu0 0
        %560 = vmatpush1.bf16.msra.mxu0 0
        %561 = vmatprep.mubr.bf16.mxu0 %v487
        %562 = vmatmul.mubr.bf16.gmra.mrb[0].mxu0 %v300
        %v563 = vpop.f32.mrb[0].mxu0
        %v564 = vadd.f32 %v524, %v563
        %v565 = vpop.f32.mrb[0].mxu0
        %v566 = vpop.f32.mrb[0].mxu0
        %v567 = vpop.f32.mrb[0].mxu0
        %568 = vdwg.mxu0
        %v569 = vunpack.c.l.bf16 %v230
        %v570 = vunpack.c.h.bf16 %v230
        %v571 = vunpack.c.l.bf16 %v231
        %v572 = vunpack.c.h.bf16 %v231
        %v573 = vadd.f32 %v569, %v570
        %v574 = vadd.f32 %v573, %v571
        %v575 = vsel %vm485, %v572, 0.0
        %v576 = vadd.f32 %v574, %v575
        %577 = vadd.xlane.f32.xlu0 %v576
        %v578 = vpop.xlane.xlu0 %577
        %v579 = vrcp.pop 480.0
        %v580 = vmul.f32 %v578, %v579
        %v581 = vmul.f32 %v569, %v569
        %v582 = vmul.f32 %v570, %v570
        %v583 = vmul.f32 %v571, %v571
        %v584 = vmul.f32 %v572, %v572
        %v585 = vadd.f32 %v581, %v582
        %v586 = vadd.f32 %v585, %v583
        %v587 = vsel %vm485, %v584, 0.0
        %v588 = vadd.f32 %v586, %v587
        %589 = vadd.xlane.f32.xlu0 %v588
        %v590 = vpop.xlane.xlu0 %589
        %v591 = vmul.f32 %v590, %v579
        %v592 = vmul.f32 %v580, %v580
        %v593 = vsub.f32 %v591, %v592
        %v594 = vadd.f32 %v593, 1e-05
        %v595 = vrsqrt.pop %v594
        %v596 = vld [vmem:[%s2] sm:$0x1]
        %v598 = vlaneseq
        %v599 = vshrl.u32 %v598, 7
        %v600 = vsub.s32 0, %v599
        %v601 = vrot.slane %v596, %v600
        %v603 = vmul.f32 %v580, %v601
        %v604 = vsub.f32 %v564, %v603
        %v605 = vmul.f32 %v595, %v604
        %v606 = vld [vmem:[%s3] sm:$0x1]
        %v608 = vlaneseq
        %v609 = vshrl.u32 %v608, 7
        %v610 = vsub.s32 0, %v609
        %v611 = vrot.slane %v606, %v610
        %v613 = vadd.f32 %v605, %v611
        %614 = vst [vmem:[%s228] sm:$0xff] %v613
        %s615 = sand.u32 %s119, 1
        %s616 = scalar_lea.sflag [#allocation4], %s615
        %s617 = sand.u32 %s119, 1
        %s618 = smul.addr %s617, 8
        %s619 = scalar_lea.vmem [#allocation7], %s618
        // Predicated region
        $region45: #{tpu_custom_call.1} parent=35 // pred_check
          %p620 = pneg %p129
        $region46: #{tpu_custom_call.1} parent=35 // pred_check_branch
          %622 = sbr.rel (%p620) target = $region48
        $region47: #{tpu_custom_call.1} parent=35 // pred_region
          %s624 = ssub.s32 128, 128
          %625 = vsyncadd %s616, %s624
          %s626 = smul.addr %s22, 128
          %s627 = scalar_lea.hbm %s4, %s626
          %s629 = sshll.u32 %s619, 4
          %s630 = int_to_ptr.vmem [resolvable:$true] %s629
          %632 = dma.vmem_to_hbm [thread:$0]  %s630, 128, %s627, %s616
        $region48: #{tpu_custom_call.1} parent=35 // pred_fallthru
          _
      $region36: #{tpu_custom_call.1} parent=5 // pred_fallthru
        _
      %p633 = scmp.le.s32.totalorder 2, %s17
      // Predicated region
      $region49: #{tpu_custom_call.1} parent=5 // pred_check
        %p634 = pneg %p633
      $region50: #{tpu_custom_call.1} parent=5 // pred_check_branch
        %636 = sbr.rel (%p634) target = $region52
      $region51: #{tpu_custom_call.1} parent=5 // pred_region
        %s637 = ssub.s32 %s17, 2
        // Predicated region
        $region53: #{tpu_custom_call.1} parent=51 // pred_check
          %p638 = pneg %p135
        $region54: #{tpu_custom_call.1} parent=51 // pred_check_branch
          %640 = sbr.rel (%p638) target = $region56
        $region55: #{tpu_custom_call.1} parent=51 // pred_region
          %s641 = sand.u32 %s120, 1
          %s642 = scalar_lea.sflag [#allocation4], %s641
          %s643 = sand.u32 %s120, 1
          %s644 = smul.addr %s643, 8
          %s645 = scalar_lea.vmem [#allocation7], %s644
          %646 = dma.done %s642, 128
        $region56: #{tpu_custom_call.1} parent=51 // pred_fallthru
          _
      $region52: #{tpu_custom_call.1} parent=5 // pred_fallthru
        _
    $region6: #{tpu_custom_call.1} parent=1 // loop_footer
      %s21 = sadd.s32 1, %s17
    $region7: #{tpu_custom_call.1} parent=1 // loop_footer_branch
      %16 = sbr.rel target = $region3
    $region8: #{tpu_custom_call.1} parent=1 // loop_exit
      _
    %647 = vsyncpa [#allocation3], 1
    %s648 = scalar_lea.sflag [#allocation3], 1
    %649 = vsyncpa %s648, 1
    %650 = vsyncpa [#allocation6], 1
    %651 = vsyncpa [#allocation4], 1
    %s652 = scalar_lea.sflag [#allocation4], 1
    %653 = vsyncpa %s652, 1

</llo_original>
